<compile_context>
chip_gen: v5e
topology: v5e:2x2
jax: 0.10.0
libtpu: 0.0.40
codegen_flags: <defaults>
</compile_context>

<pallas_src>
import functools

import numpy as np
import jax
import jax.numpy as jnp
from jax.experimental import pallas as pl
from jax.experimental.pallas import tpu as pltpu  # noqa: F401 (TPU backend)


def critic_kernel(st_ref, ac_ref, w1s_ref, w1a_ref, w2_ref, p_ref, out_ref):
    # Static shapes from the refs.
    batch = st_ref.shape[0]
    h1_units = w1s_ref.shape[1]
    h2_units = w2_ref.shape[1]

    # Packed small f32 params: row0=b1, row1=b2, row2=w3-row, row3[0]=b3.
    b1 = p_ref[0:1, :h1_units]          # (1, H1)
    b2 = p_ref[1:2, :h2_units]          # (1, H2)
    w3 = p_ref[2:3, :h2_units]          # (1, H2)
    b3 = p_ref[3:4, 0:1]                # (1, 1)

    mm = w1s_ref.dtype                  # bf16 MXU inputs, f32 accumulation

    # fc1 + relu: split matmul over the pre-split state/action weight halves
    # (no HBM concat, no in-kernel sub-tile weight slice).
    h1 = (jnp.dot(st_ref[...].astype(mm), w1s_ref[...],
                  preferred_element_type=jnp.float32)
          + jnp.dot(ac_ref[...].astype(mm), w1a_ref[...],
                    preferred_element_type=jnp.float32)
          + b1)
    h1 = jnp.maximum(h1, 0.0)                                   # (B, H1) f32

    # BatchNorm1d (training-mode batch stats), single pass over h1 (f32).
    inv_b = 1.0 / batch
    s = jnp.sum(h1, axis=0, keepdims=True)                      # (1, H1)
    ss = jnp.sum(h1 * h1, axis=0, keepdims=True)                # (1, H1)
    mean = s * inv_b
    var = jnp.maximum(ss * inv_b - mean * mean, 0.0)
    h1n = (h1 - mean) * jax.lax.rsqrt(var + 1e-5)               # EUP rsqrt

    # fc2 + relu (bf16 matmul, f32 accumulation; bias/relu in f32).
    h2 = jnp.dot(h1n.astype(mm), w2_ref[...],
                 preferred_element_type=jnp.float32) + b2
    h2 = jnp.maximum(h2, 0.0)                                   # (B, H2) f32

    # fc3: 1-wide output -> VPU multiply + XLU lane reduction (no MXU).
    q = jnp.sum(h2 * w3, axis=1, keepdims=True) + b3            # (B, 1)
    out_ref[...] = q


def prepare_params(params, state_dim):
    """One-time (per parameter update) weight-side preparation.

    Transposes, pre-splits W1 into state/action halves, casts matmul weights
    to bf16, and packs the tiny f32 params (b1, b2, w3-row, b3) into a single
    operand. Cache the result and reuse it across forward calls.
    """
    w1, b1, w2, b2, w3, b3 = params
    h1_units = w1.shape[0]
    h2_units = w2.shape[0]
    hmax = max(h1_units, h2_units)
    mm = jnp.bfloat16

    w1t = w1.T                                     # (D_in, H1)
    w1s = w1t[:state_dim, :].astype(mm)            # (D_s, H1)
    w1a = w1t[state_dim:, :].astype(mm)            # (D_a, H1)
    w2t = w2.T.astype(mm)                          # (H1,  H2)

    packed = jnp.zeros((4, hmax), jnp.float32)
    packed = packed.at[0, :h1_units].set(b1)
    packed = packed.at[1, :h2_units].set(b2)
    packed = packed.at[2, :h2_units].set(w3.reshape(-1))
    packed = packed.at[3, 0].set(b3[0])
    return (w1s, w1a, w2t, packed)


@jax.jit
def critic_forward(states, actions, prepared):
    """Per-call wrapper: a single pallas_call, no per-call weight plumbing."""
    w1s, w1a, w2t, packed = prepared
    batch = states.shape[0]
    d_s, h1_units = w1s.shape
    d_a = w1a.shape[0]
    h2_units = w2t.shape[1]

    flops = 2 * batch * (d_s * h1_units + d_a * h1_units
                         + h1_units * h2_units + h2_units)
    bytes_accessed = (states.size * 4 + actions.size * 4
                      + w1s.size * 2 + w1a.size * 2 + w2t.size * 2
                      + packed.size * 4 + batch * 4)

    full = lambda shape: pl.BlockSpec(shape, lambda: tuple(0 for _ in shape))

    return pl.pallas_call(
        critic_kernel,
        out_shape=jax.ShapeDtypeStruct((batch, 1), jnp.float32),
        in_specs=[
            full(states.shape),
            full(actions.shape),
            full(w1s.shape),
            full(w1a.shape),
            full(w2t.shape),
            full(packed.shape),
        ],
        out_specs=full((batch, 1)),
        cost_estimate=pl.CostEstimate(
            flops=flops,
            transcendentals=h1_units,            # rsqrt over H1 features
            bytes_accessed=bytes_accessed),
    )(states, actions, w1s, w1a, w2t, packed)


def init_params(key, state_size, action_size, layer_in_out):
    """Deterministic init mirroring the module's __init__ / reset_parameters."""
    d_in = (state_size + action_size) * 2
    h1, h2 = layer_in_out
    ks = jax.random.split(key, 6)

    # reset_parameters: weight ~ U(-1/sqrt(fan_in), 1/sqrt(fan_in)) with the
    # module's (quirky) fan_in = weight.size()[0] = out_features.
    lim1 = 1.0 / np.sqrt(h1)
    lim2 = 1.0 / np.sqrt(h2)
    w1 = jax.random.uniform(ks[0], (h1, d_in), jnp.float32, -lim1, lim1)
    w2 = jax.random.uniform(ks[1], (h2, h1), jnp.float32, -lim2, lim2)
    w3 = jax.random.uniform(ks[2], (1, h2), jnp.float32, -3e-3, 3e-3)

    # Biases keep nn.Linear's default U(-1/sqrt(in_features), 1/sqrt(in_features)).
    b1 = jax.random.uniform(ks[3], (h1,), jnp.float32,
                            -1.0 / np.sqrt(d_in), 1.0 / np.sqrt(d_in))
    b2 = jax.random.uniform(ks[4], (h2,), jnp.float32,
                            -1.0 / np.sqrt(h1), 1.0 / np.sqrt(h1))
    b3 = jax.random.uniform(ks[5], (1,), jnp.float32,
                            -1.0 / np.sqrt(h2), 1.0 / np.sqrt(h2))
    return (w1, b1, w2, b2, w3, b3)


def reference_forward(states, actions, params):
    """Pure-JAX f32 reference matching the PyTorch module forward."""
    w1, b1, w2, b2, w3, b3 = params
    xs = jnp.concatenate([states, actions], axis=1)
    h1 = jnp.maximum(xs @ w1.T + b1, 0.0)
    mean = jnp.mean(h1, axis=0, keepdims=True)
    var = jnp.mean((h1 - mean) ** 2, axis=0, keepdims=True)
    h1 = (h1 - mean) / jnp.sqrt(var + 1e-5)
    h2 = jnp.maximum(h1 @ w2.T + b2, 0.0)
    return h2 @ w3.T + b3


if __name__ == "__main__":
    # Shapes consistent with the module: two-agent concat of state+action.
    state_size = 8
    action_size = 4
    layer_in_out = (32, 32)
    batch = 256   # larger resident batch per call amortizes launch overhead

    key = jax.random.PRNGKey(0)
    k_s, k_a, k_p = jax.random.split(key, 3)
    states = jax.random.normal(k_s, (batch, state_size * 2), jnp.float32)    # (256, 16)
    actions = jax.random.normal(k_a, (batch, action_size * 2), jnp.float32)  # (256, 8)
    params = init_params(k_p, state_size, action_size, layer_in_out)

    # Weight-side preparation done once; reused across forward calls.
    prepared = jax.tree_util.tree_map(
        jax.block_until_ready, prepare_params(params, state_size * 2))

    q = jax.block_until_ready(critic_forward(states, actions, prepared))
    q_ref = reference_forward(states, actions, params)

    # bf16 matmul inputs -> loosen tolerance vs. the f32 reference.
    np.testing.assert_allclose(np.asarray(q), np.asarray(q_ref), rtol=2e-2, atol=2e-3)
    assert q.shape == (batch, 1)
    print("KERNEL_OK")
</pallas_src>

<mosaic_0001>
module attributes {stable_mosaic.version = 11 : i64} {
  func.func @critic_kernel(%arg0: memref<256x16xf32, #tpu.memory_space<vmem>>, %arg1: memref<256x8xf32, #tpu.memory_space<vmem>>, %arg2: memref<16x32xbf16, #tpu.memory_space<vmem>>, %arg3: memref<8x32xbf16, #tpu.memory_space<vmem>>, %arg4: memref<32x32xbf16, #tpu.memory_space<vmem>>, %arg5: memref<4x32xf32, #tpu.memory_space<vmem>>, %arg6: memref<256x1xf32, #tpu.memory_space<vmem>>) attributes {dimension_semantics = [], scalar_prefetch = 0 : i64, scratch_operands = 0 : i64, tpu.core_type = #tpu.core_type<tc>} {
    %c0 = arith.constant 0 : index
    %c0_0 = arith.constant 0 : index
    %0 = vector.load %arg5[%c0, %c0_0] : memref<4x32xf32, #tpu.memory_space<vmem>>, vector<1x32xf32>
    %c1 = arith.constant 1 : index
    %c0_1 = arith.constant 0 : index
    %1 = vector.load %arg5[%c1, %c0_1] : memref<4x32xf32, #tpu.memory_space<vmem>>, vector<1x32xf32>
    %c2 = arith.constant 2 : index
    %c0_2 = arith.constant 0 : index
    %2 = vector.load %arg5[%c2, %c0_2] : memref<4x32xf32, #tpu.memory_space<vmem>>, vector<1x32xf32>
    %c3 = arith.constant 3 : index
    %c0_3 = arith.constant 0 : index
    %3 = vector.load %arg5[%c3, %c0_3] : memref<4x32xf32, #tpu.memory_space<vmem>>, vector<1x1xf32>
    %c0_4 = arith.constant 0 : index
    %c0_5 = arith.constant 0 : index
    %4 = vector.load %arg0[%c0_4, %c0_5] : memref<256x16xf32, #tpu.memory_space<vmem>>, vector<256x16xf32>
    %5 = arith.truncf %4 : vector<256x16xf32> to vector<256x16xbf16>
    %c0_6 = arith.constant 0 : index
    %c0_7 = arith.constant 0 : index
    %6 = vector.load %arg2[%c0_6, %c0_7] : memref<16x32xbf16, #tpu.memory_space<vmem>>, vector<16x32xbf16>
    %cst = arith.constant dense<0.000000e+00> : vector<256x32xf32>
    %7 = tpu.matmul %5, %6, %cst {dimension_numbers = #tpu.dot_dimension_numbers<[1], [0], [0], [1], [0, 0, 1, 1], [], []>} : vector<256x16xbf16>, vector<16x32xbf16>, vector<256x32xf32> -> vector<256x32xf32>
    %c0_8 = arith.constant 0 : index
    %c0_9 = arith.constant 0 : index
    %8 = vector.load %arg1[%c0_8, %c0_9] : memref<256x8xf32, #tpu.memory_space<vmem>>, vector<256x8xf32>
    %9 = arith.truncf %8 : vector<256x8xf32> to vector<256x8xbf16>
    %c0_10 = arith.constant 0 : index
    %c0_11 = arith.constant 0 : index
    %10 = vector.load %arg3[%c0_10, %c0_11] : memref<8x32xbf16, #tpu.memory_space<vmem>>, vector<8x32xbf16>
    %cst_12 = arith.constant dense<0.000000e+00> : vector<256x32xf32>
    %11 = tpu.matmul %9, %10, %cst_12 {dimension_numbers = #tpu.dot_dimension_numbers<[1], [0], [0], [1], [0, 0, 1, 1], [], []>} : vector<256x8xbf16>, vector<8x32xbf16>, vector<256x32xf32> -> vector<256x32xf32>
    %12 = arith.addf %7, %11 : vector<256x32xf32>
    %13 = vector.broadcast %0 : vector<1x32xf32> to vector<256x32xf32>
    %14 = arith.addf %12, %13 : vector<256x32xf32>
    %cst_13 = arith.constant 0.000000e+00 : f32
    %15 = vector.broadcast %cst_13 : f32 to vector<256x32xf32>
    %16 = arith.maximumf %14, %15 : vector<256x32xf32>
    %cst_14 = arith.constant dense<0.000000e+00> : vector<32xf32>
    %17 = vector.multi_reduction <add>, %16, %cst_14 [0] : vector<256x32xf32> to vector<32xf32>
    %18 = vector.shape_cast %17 : vector<32xf32> to vector<1x32xf32>
    %19 = arith.mulf %16, %16 : vector<256x32xf32>
    %cst_15 = arith.constant dense<0.000000e+00> : vector<32xf32>
    %20 = vector.multi_reduction <add>, %19, %cst_15 [0] : vector<256x32xf32> to vector<32xf32>
    %21 = vector.shape_cast %20 : vector<32xf32> to vector<1x32xf32>
    %cst_16 = arith.constant 3.906250e-03 : f32
    %22 = vector.broadcast %cst_16 : f32 to vector<1x32xf32>
    %23 = arith.mulf %18, %22 : vector<1x32xf32>
    %cst_17 = arith.constant 3.906250e-03 : f32
    %24 = vector.broadcast %cst_17 : f32 to vector<1x32xf32>
    %25 = arith.mulf %21, %24 : vector<1x32xf32>
    %26 = arith.mulf %23, %23 : vector<1x32xf32>
    %27 = arith.subf %25, %26 : vector<1x32xf32>
    %cst_18 = arith.constant 0.000000e+00 : f32
    %28 = vector.broadcast %cst_18 : f32 to vector<1x32xf32>
    %29 = arith.maximumf %27, %28 : vector<1x32xf32>
    %30 = vector.broadcast %23 : vector<1x32xf32> to vector<256x32xf32>
    %31 = arith.subf %16, %30 : vector<256x32xf32>
    %cst_19 = arith.constant 9.99999974E-6 : f32
    %32 = vector.broadcast %cst_19 : f32 to vector<1x32xf32>
    %33 = arith.addf %29, %32 : vector<1x32xf32>
    %34 = math.rsqrt %33 : vector<1x32xf32>
    %35 = vector.broadcast %34 : vector<1x32xf32> to vector<256x32xf32>
    %36 = arith.mulf %31, %35 : vector<256x32xf32>
    %37 = arith.truncf %36 : vector<256x32xf32> to vector<256x32xbf16>
    %c0_20 = arith.constant 0 : index
    %c0_21 = arith.constant 0 : index
    %38 = vector.load %arg4[%c0_20, %c0_21] : memref<32x32xbf16, #tpu.memory_space<vmem>>, vector<32x32xbf16>
    %cst_22 = arith.constant dense<0.000000e+00> : vector<256x32xf32>
    %39 = tpu.matmul %37, %38, %cst_22 {dimension_numbers = #tpu.dot_dimension_numbers<[1], [0], [0], [1], [0, 0, 1, 1], [], []>} : vector<256x32xbf16>, vector<32x32xbf16>, vector<256x32xf32> -> vector<256x32xf32>
    %40 = vector.broadcast %1 : vector<1x32xf32> to vector<256x32xf32>
    %41 = arith.addf %39, %40 : vector<256x32xf32>
    %cst_23 = arith.constant 0.000000e+00 : f32
    %42 = vector.broadcast %cst_23 : f32 to vector<256x32xf32>
    %43 = arith.maximumf %41, %42 : vector<256x32xf32>
    %44 = vector.broadcast %2 : vector<1x32xf32> to vector<256x32xf32>
    %45 = arith.mulf %43, %44 : vector<256x32xf32>
    %cst_24 = arith.constant dense<0.000000e+00> : vector<256xf32>
    %46 = vector.multi_reduction <add>, %45, %cst_24 [1] : vector<256x32xf32> to vector<256xf32>
    %47 = vector.shape_cast %46 : vector<256xf32> to vector<256x1xf32>
    %48 = vector.broadcast %3 : vector<1x1xf32> to vector<256x1xf32>
    %49 = arith.addf %47, %48 : vector<256x1xf32>
    %c0_25 = arith.constant 0 : index
    %c0_26 = arith.constant 0 : index
    %50 = vector.load %arg6[%c0_25, %c0_26] : memref<256x1xf32, #tpu.memory_space<vmem>>, vector<256x1xf32>
    tpu.vector_store %arg6[%c0_25, %c0_26], %49 {strides = array<i32>} : memref<256x1xf32, #tpu.memory_space<vmem>>, vector<256x1xf32>,
    return
  }
}

</mosaic_0001>

<llo_original>
// kernel: critic_forward.1
$region0: #{critic_forward.1}
  #allocation0 [shape = 'u32[]', space=smem, size = 0x4, offset = 0x4, fixed_abs, tag = 'smem constant byte address 0x4 - core index']
  #allocation1 [shape = 'u32[72,128]{1,0:T(1,128)}', space=vmem, size = 0x9000, scoped, tag = 'internal scratch']
  %s0 = inlined_call_operand.vmem [shape: f32[256,16], index: 0, kind: input, shape index: {}]
  %s1 = inlined_call_operand.vmem [shape: f32[256,8], index: 1, kind: input, shape index: {}]
  %s2 = inlined_call_operand.vmem [shape: bf16[16,32], index: 2, kind: input, shape index: {}]
  %s3 = inlined_call_operand.vmem [shape: bf16[8,32], index: 3, kind: input, shape index: {}]
  %s4 = inlined_call_operand.vmem [shape: bf16[32,32], index: 4, kind: input, shape index: {}]
  %s5 = inlined_call_operand.vmem [shape: f32[4,32], index: 5, kind: input, shape index: {}]
  %s6 = inlined_call_operand.vmem [shape: f32[256,1], index: 6, kind: output, shape index: {}]
  %s7 = sld [smem:[#allocation0]]
  $region34: #{critic_forward.1} parent=0
    _
  %s9 = ssub.s32 1, %s7
  %s10 = scalar_select 0, %s9, %s7
  // Predicated region
  $region2: #{critic_forward.1} parent=0 // pred_check
    _
  $region3: #{critic_forward.1} parent=0 // pred_check_branch
    %12 = sbr.rel (0) target = $region5
  $region4: #{critic_forward.1} parent=0 // pred_region
    _
  $region5: #{critic_forward.1} parent=0 // pred_fallthru
    _
  // Predicated region
  $region6: #{critic_forward.1} parent=0 // pred_check
    _
  $region7: #{critic_forward.1} parent=0 // pred_check_branch
    %14 = sbr.rel (0) target = $region9
  $region8: #{critic_forward.1} parent=0 // pred_region
    _
  $region9: #{critic_forward.1} parent=0 // pred_fallthru
    _
  // Predicated region
  $region10: #{critic_forward.1} parent=0 // pred_check
    _
  $region11: #{critic_forward.1} parent=0 // pred_check_branch
    %16 = sbr.rel (0) target = $region13
  $region12: #{critic_forward.1} parent=0 // pred_region
    _
  $region13: #{critic_forward.1} parent=0 // pred_fallthru
    _
  // Predicated region
  $region14: #{critic_forward.1} parent=0 // pred_check
    _
  $region15: #{critic_forward.1} parent=0 // pred_check_branch
    %18 = sbr.rel (0) target = $region17
  $region16: #{critic_forward.1} parent=0 // pred_region
    _
  $region17: #{critic_forward.1} parent=0 // pred_fallthru
    _
  // Predicated region
  $region18: #{critic_forward.1} parent=0 // pred_check
    _
  $region19: #{critic_forward.1} parent=0 // pred_check_branch
    %20 = sbr.rel (0) target = $region21
  $region20: #{critic_forward.1} parent=0 // pred_region
    _
  $region21: #{critic_forward.1} parent=0 // pred_fallthru
    _
  // Predicated region
  $region22: #{critic_forward.1} parent=0 // pred_check
    _
  $region23: #{critic_forward.1} parent=0 // pred_check_branch
    %22 = sbr.rel (0) target = $region25
  $region24: #{critic_forward.1} parent=0 // pred_region
    _
  $region25: #{critic_forward.1} parent=0 // pred_fallthru
    _
  %v24 = vld [vmem:[%s5] sm:$0x1]
  %v25 = vld [vmem:[%s5 + $0x1] sm:$0x1]
  %v26 = vld [vmem:[%s5 + $0x2] sm:$0x1]
  %v27 = vld [vmem:[%s5 + $0x3] sm:$0x1]
  %v28 = vld [vmem:[%s0] sm:$0xff]
  %v29 = vld [vmem:[%s0 + $0x8] sm:$0xff]
  %v30 = vld [vmem:[%s0 + $0x10] sm:$0xff]
  %v31 = vld [vmem:[%s0 + $0x18] sm:$0xff]
  %v32 = vld [vmem:[%s0 + $0x20] sm:$0xff]
  %v33 = vld [vmem:[%s0 + $0x28] sm:$0xff]
  %v34 = vld [vmem:[%s0 + $0x30] sm:$0xff]
  %v35 = vld [vmem:[%s0 + $0x38] sm:$0xff]
  %v36 = vld [vmem:[%s0 + $0x40] sm:$0xff]
  %v37 = vld [vmem:[%s0 + $0x48] sm:$0xff]
  %v38 = vld [vmem:[%s0 + $0x50] sm:$0xff]
  %v39 = vld [vmem:[%s0 + $0x58] sm:$0xff]
  %v40 = vld [vmem:[%s0 + $0x60] sm:$0xff]
  %v41 = vld [vmem:[%s0 + $0x68] sm:$0xff]
  %v42 = vld [vmem:[%s0 + $0x70] sm:$0xff]
  %v43 = vld [vmem:[%s0 + $0x78] sm:$0xff]
  %v44 = vld [vmem:[%s0 + $0x80] sm:$0xff]
  %v45 = vld [vmem:[%s0 + $0x88] sm:$0xff]
  %v46 = vld [vmem:[%s0 + $0x90] sm:$0xff]
  %v47 = vld [vmem:[%s0 + $0x98] sm:$0xff]
  %v48 = vld [vmem:[%s0 + $0xa0] sm:$0xff]
  %v49 = vld [vmem:[%s0 + $0xa8] sm:$0xff]
  %v50 = vld [vmem:[%s0 + $0xb0] sm:$0xff]
  %v51 = vld [vmem:[%s0 + $0xb8] sm:$0xff]
  %v52 = vld [vmem:[%s0 + $0xc0] sm:$0xff]
  %v53 = vld [vmem:[%s0 + $0xc8] sm:$0xff]
  %v54 = vld [vmem:[%s0 + $0xd0] sm:$0xff]
  %v55 = vld [vmem:[%s0 + $0xd8] sm:$0xff]
  %v56 = vld [vmem:[%s0 + $0xe0] sm:$0xff]
  %v57 = vld [vmem:[%s0 + $0xe8] sm:$0xff]
  %v58 = vld [vmem:[%s0 + $0xf0] sm:$0xff]
  %v59 = vld [vmem:[%s0 + $0xf8] sm:$0xff]
  %v60 = vpack.c.bf16 %v29, %v28
  %v61 = vpack.c.bf16 %v31, %v30
  %v62 = vpack.c.bf16 %v33, %v32
  %v63 = vpack.c.bf16 %v35, %v34
  %v64 = vpack.c.bf16 %v37, %v36
  %v65 = vpack.c.bf16 %v39, %v38
  %v66 = vpack.c.bf16 %v41, %v40
  %v67 = vpack.c.bf16 %v43, %v42
  %v68 = vpack.c.bf16 %v45, %v44
  %v69 = vpack.c.bf16 %v47, %v46
  %v70 = vpack.c.bf16 %v49, %v48
  %v71 = vpack.c.bf16 %v51, %v50
  %v72 = vpack.c.bf16 %v53, %v52
  %v73 = vpack.c.bf16 %v55, %v54
  %v74 = vpack.c.bf16 %v57, %v56
  %v75 = vpack.c.bf16 %v59, %v58
  %v76 = vld [vmem:[%s2] sm:$0xf]
  %v77 = vld [vmem:[%s2 + $0x4] sm:$0xf]
  %v78 = vld [vmem:[%s1] sm:$0xff]
  %v79 = vld [vmem:[%s1 + $0x8] sm:$0xff]
  %v80 = vld [vmem:[%s1 + $0x10] sm:$0xff]
  %v81 = vld [vmem:[%s1 + $0x18] sm:$0xff]
  %v82 = vld [vmem:[%s1 + $0x20] sm:$0xff]
  %v83 = vld [vmem:[%s1 + $0x28] sm:$0xff]
  %v84 = vld [vmem:[%s1 + $0x30] sm:$0xff]
  %v85 = vld [vmem:[%s1 + $0x38] sm:$0xff]
  %v86 = vld [vmem:[%s1 + $0x40] sm:$0xff]
  %v87 = vld [vmem:[%s1 + $0x48] sm:$0xff]
  %v88 = vld [vmem:[%s1 + $0x50] sm:$0xff]
  %v89 = vld [vmem:[%s1 + $0x58] sm:$0xff]
  %v90 = vld [vmem:[%s1 + $0x60] sm:$0xff]
  %v91 = vld [vmem:[%s1 + $0x68] sm:$0xff]
  %v92 = vld [vmem:[%s1 + $0x70] sm:$0xff]
  %v93 = vld [vmem:[%s1 + $0x78] sm:$0xff]
  %v94 = vld [vmem:[%s1 + $0x80] sm:$0xff]
  %v95 = vld [vmem:[%s1 + $0x88] sm:$0xff]
  %v96 = vld [vmem:[%s1 + $0x90] sm:$0xff]
  %v97 = vld [vmem:[%s1 + $0x98] sm:$0xff]
  %v98 = vld [vmem:[%s1 + $0xa0] sm:$0xff]
  %v99 = vld [vmem:[%s1 + $0xa8] sm:$0xff]
  %v100 = vld [vmem:[%s1 + $0xb0] sm:$0xff]
  %v101 = vld [vmem:[%s1 + $0xb8] sm:$0xff]
  %v102 = vld [vmem:[%s1 + $0xc0] sm:$0xff]
  %v103 = vld [vmem:[%s1 + $0xc8] sm:$0xff]
  %v104 = vld [vmem:[%s1 + $0xd0] sm:$0xff]
  %v105 = vld [vmem:[%s1 + $0xd8] sm:$0xff]
  %v106 = vld [vmem:[%s1 + $0xe0] sm:$0xff]
  %v107 = vld [vmem:[%s1 + $0xe8] sm:$0xff]
  %v108 = vld [vmem:[%s1 + $0xf0] sm:$0xff]
  %v109 = vld [vmem:[%s1 + $0xf8] sm:$0xff]
  %v110 = vpack.c.bf16 %v79, %v78
  %v111 = vpack.c.bf16 %v81, %v80
  %v112 = vpack.c.bf16 %v83, %v82
  %v113 = vpack.c.bf16 %v85, %v84
  %v114 = vpack.c.bf16 %v87, %v86
  %v115 = vpack.c.bf16 %v89, %v88
  %v116 = vpack.c.bf16 %v91, %v90
  %v117 = vpack.c.bf16 %v93, %v92
  %v118 = vpack.c.bf16 %v95, %v94
  %v119 = vpack.c.bf16 %v97, %v96
  %v120 = vpack.c.bf16 %v99, %v98
  %v121 = vpack.c.bf16 %v101, %v100
  %v122 = vpack.c.bf16 %v103, %v102
  %v123 = vpack.c.bf16 %v105, %v104
  %v124 = vpack.c.bf16 %v107, %v106
  %v125 = vpack.c.bf16 %v109, %v108
  %v126 = vld [vmem:[%s3] sm:$0xf]
  %vm127 = vcmask 64512
  %v129 = vsel %vm127, %v110, 0
  %v132 = vsel %vm127, %v111, 0
  %v135 = vsel %vm127, %v112, 0
  %v138 = vsel %vm127, %v113, 0
  %v141 = vsel %vm127, %v114, 0
  %v144 = vsel %vm127, %v115, 0
  %v147 = vsel %vm127, %v116, 0
  %v150 = vsel %vm127, %v117, 0
  %v153 = vsel %vm127, %v118, 0
  %v156 = vsel %vm127, %v119, 0
  %v159 = vsel %vm127, %v120, 0
  %v162 = vsel %vm127, %v121, 0
  %v165 = vsel %vm127, %v122, 0
  %v168 = vsel %vm127, %v123, 0
  %v171 = vsel %vm127, %v124, 0
  %v174 = vsel %vm127, %v125, 0
  %vm176 = vcmask 1043456
  %v178 = vsel %vm176, %v126, 0
  %180 = vmatpush.bf16.msra.mxu0 0
  %181 = vmatpush.bf16.msra.mxu0 0
  %182 = vmatpush.bf16.msra.mxu0 0
  %183 = vmatpush.bf16.msra.mxu0 0
  %184 = vmatpush.bf16.msra.mxu0 0
  %185 = vmatpush.bf16.msra.mxu0 0
  %186 = vmatpush.bf16.msra.mxu0 0
  %187 = vmatpush.bf16.msra.mxu0 %v178
  %188 = vmatmul.bf16.gmra.mxu0 %v129
  %v189 = vpop.f32.mrf.mxu0
  %v190 = vadd.f32 0.0, %v189
  %v191 = vpop.f32.mrf.mxu0
  %v192 = vadd.f32 0.0, %v191
  %193 = vmatmul.bf16.gmra.mxu0 %v132
  %v194 = vpop.f32.mrf.mxu0
  %v195 = vadd.f32 0.0, %v194
  %v196 = vpop.f32.mrf.mxu0
  %v197 = vadd.f32 0.0, %v196
  %198 = vmatmul.bf16.gmra.mxu0 %v135
  %v199 = vpop.f32.mrf.mxu0
  %v200 = vadd.f32 0.0, %v199
  %v201 = vpop.f32.mrf.mxu0
  %v202 = vadd.f32 0.0, %v201
  %203 = vmatmul.bf16.gmra.mxu0 %v138
  %v204 = vpop.f32.mrf.mxu0
  %v205 = vadd.f32 0.0, %v204
  %v206 = vpop.f32.mrf.mxu0
  %v207 = vadd.f32 0.0, %v206
  %208 = vmatmul.bf16.gmra.mxu0 %v141
  %v209 = vpop.f32.mrf.mxu0
  %v210 = vadd.f32 0.0, %v209
  %v211 = vpop.f32.mrf.mxu0
  %v212 = vadd.f32 0.0, %v211
  %213 = vmatmul.bf16.gmra.mxu0 %v144
  %v214 = vpop.f32.mrf.mxu0
  %v215 = vadd.f32 0.0, %v214
  %v216 = vpop.f32.mrf.mxu0
  %v217 = vadd.f32 0.0, %v216
  %218 = vmatmul.bf16.gmra.mxu0 %v147
  %v219 = vpop.f32.mrf.mxu0
  %v220 = vadd.f32 0.0, %v219
  %v221 = vpop.f32.mrf.mxu0
  %v222 = vadd.f32 0.0, %v221
  %223 = vmatmul.bf16.gmra.mxu0 %v150
  %v224 = vpop.f32.mrf.mxu0
  %v225 = vadd.f32 0.0, %v224
  %v226 = vpop.f32.mrf.mxu0
  %v227 = vadd.f32 0.0, %v226
  %228 = vmatmul.bf16.gmra.mxu0 %v153
  %v229 = vpop.f32.mrf.mxu0
  %v230 = vadd.f32 0.0, %v229
  %v231 = vpop.f32.mrf.mxu0
  %v232 = vadd.f32 0.0, %v231
  %233 = vmatmul.bf16.gmra.mxu0 %v156
  %v234 = vpop.f32.mrf.mxu0
  %v235 = vadd.f32 0.0, %v234
  %v236 = vpop.f32.mrf.mxu0
  %v237 = vadd.f32 0.0, %v236
  %238 = vmatmul.bf16.gmra.mxu0 %v159
  %v239 = vpop.f32.mrf.mxu0
  %v240 = vadd.f32 0.0, %v239
  %v241 = vpop.f32.mrf.mxu0
  %v242 = vadd.f32 0.0, %v241
  %243 = vmatmul.bf16.gmra.mxu0 %v162
  %v244 = vpop.f32.mrf.mxu0
  %v245 = vadd.f32 0.0, %v244
  %v246 = vpop.f32.mrf.mxu0
  %v247 = vadd.f32 0.0, %v246
  %248 = vmatmul.bf16.gmra.mxu0 %v165
  %v249 = vpop.f32.mrf.mxu0
  %v250 = vadd.f32 0.0, %v249
  %v251 = vpop.f32.mrf.mxu0
  %v252 = vadd.f32 0.0, %v251
  %253 = vmatmul.bf16.gmra.mxu0 %v168
  %v254 = vpop.f32.mrf.mxu0
  %v255 = vadd.f32 0.0, %v254
  %v256 = vpop.f32.mrf.mxu0
  %v257 = vadd.f32 0.0, %v256
  %258 = vmatmul.bf16.gmra.mxu0 %v171
  %v259 = vpop.f32.mrf.mxu0
  %v260 = vadd.f32 0.0, %v259
  %v261 = vpop.f32.mrf.mxu0
  %v262 = vadd.f32 0.0, %v261
  %263 = vmatmul.bf16.gmra.mxu0 %v174
  %v264 = vpop.f32.mrf.mxu0
  %v265 = vadd.f32 0.0, %v264
  %v266 = vpop.f32.mrf.mxu0
  %v267 = vadd.f32 0.0, %v266
  %268 = vdwg.mxu0
  %v271 = vunpack.c.l.b16 %v76
  %v272 = vunpack.c.l.b16 %v77
  %v273 = vpack.c.b16 %v272, %v271
  %vm275 = vcmask 130048
  %v277 = vsel %vm275, %v60, 0
  %v280 = vsel %vm275, %v61, 0
  %v283 = vsel %vm275, %v62, 0
  %v286 = vsel %vm275, %v63, 0
  %v289 = vsel %vm275, %v64, 0
  %v292 = vsel %vm275, %v65, 0
  %v295 = vsel %vm275, %v66, 0
  %v298 = vsel %vm275, %v67, 0
  %v301 = vsel %vm275, %v68, 0
  %v304 = vsel %vm275, %v69, 0
  %v307 = vsel %vm275, %v70, 0
  %v310 = vsel %vm275, %v71, 0
  %v313 = vsel %vm275, %v72, 0
  %v316 = vsel %vm275, %v73, 0
  %v319 = vsel %vm275, %v74, 0
  %v322 = vsel %vm275, %v75, 0
  %324 = vmatpush.bf16.msra.mxu0 0
  %325 = vmatpush.bf16.msra.mxu0 0
  %326 = vmatpush.bf16.msra.mxu0 0
  %327 = vmatpush.bf16.msra.mxu0 0
  %328 = vmatpush.bf16.msra.mxu0 0
  %329 = vmatpush.bf16.msra.mxu0 0
  %330 = vmatpush.bf16.msra.mxu0 0
  %331 = vmatpush.bf16.msra.mxu0 %v273
  %332 = vmatmul.bf16.gmra.mxu0 %v277
  %v333 = vpop.f32.mrf.mxu0
  %v334 = vadd.f32 %v190, %v333
  %v335 = vpop.f32.mrf.mxu0
  %v336 = vadd.f32 %v192, %v335
  %337 = vmatmul.bf16.gmra.mxu0 %v280
  %v338 = vpop.f32.mrf.mxu0
  %v339 = vadd.f32 %v195, %v338
  %v340 = vpop.f32.mrf.mxu0
  %v341 = vadd.f32 %v197, %v340
  %342 = vmatmul.bf16.gmra.mxu0 %v283
  %v343 = vpop.f32.mrf.mxu0
  %v344 = vadd.f32 %v200, %v343
  %v345 = vpop.f32.mrf.mxu0
  %v346 = vadd.f32 %v202, %v345
  %347 = vmatmul.bf16.gmra.mxu0 %v286
  %v348 = vpop.f32.mrf.mxu0
  %v349 = vadd.f32 %v205, %v348
  %v350 = vpop.f32.mrf.mxu0
  %v351 = vadd.f32 %v207, %v350
  %352 = vmatmul.bf16.gmra.mxu0 %v289
  %v353 = vpop.f32.mrf.mxu0
  %v354 = vadd.f32 %v210, %v353
  %v355 = vpop.f32.mrf.mxu0
  %v356 = vadd.f32 %v212, %v355
  %357 = vmatmul.bf16.gmra.mxu0 %v292
  %v358 = vpop.f32.mrf.mxu0
  %v359 = vadd.f32 %v215, %v358
  %v360 = vpop.f32.mrf.mxu0
  %v361 = vadd.f32 %v217, %v360
  %362 = vmatmul.bf16.gmra.mxu0 %v295
  %v363 = vpop.f32.mrf.mxu0
  %v364 = vadd.f32 %v220, %v363
  %v365 = vpop.f32.mrf.mxu0
  %v366 = vadd.f32 %v222, %v365
  %367 = vmatmul.bf16.gmra.mxu0 %v298
  %v368 = vpop.f32.mrf.mxu0
  %v369 = vadd.f32 %v225, %v368
  %v370 = vpop.f32.mrf.mxu0
  %v371 = vadd.f32 %v227, %v370
  %372 = vmatmul.bf16.gmra.mxu0 %v301
  %v373 = vpop.f32.mrf.mxu0
  %v374 = vadd.f32 %v230, %v373
  %v375 = vpop.f32.mrf.mxu0
  %v376 = vadd.f32 %v232, %v375
  %377 = vmatmul.bf16.gmra.mxu0 %v304
  %v378 = vpop.f32.mrf.mxu0
  %v379 = vadd.f32 %v235, %v378
  %v380 = vpop.f32.mrf.mxu0
  %v381 = vadd.f32 %v237, %v380
  %382 = vmatmul.bf16.gmra.mxu0 %v307
  %v383 = vpop.f32.mrf.mxu0
  %v384 = vadd.f32 %v240, %v383
  %v385 = vpop.f32.mrf.mxu0
  %v386 = vadd.f32 %v242, %v385
  %387 = vmatmul.bf16.gmra.mxu0 %v310
  %v388 = vpop.f32.mrf.mxu0
  %v389 = vadd.f32 %v245, %v388
  %v390 = vpop.f32.mrf.mxu0
  %v391 = vadd.f32 %v247, %v390
  %392 = vmatmul.bf16.gmra.mxu0 %v313
  %v393 = vpop.f32.mrf.mxu0
  %v394 = vadd.f32 %v250, %v393
  %v395 = vpop.f32.mrf.mxu0
  %v396 = vadd.f32 %v252, %v395
  %397 = vmatmul.bf16.gmra.mxu0 %v316
  %v398 = vpop.f32.mrf.mxu0
  %v399 = vadd.f32 %v255, %v398
  %v400 = vpop.f32.mrf.mxu0
  %v401 = vadd.f32 %v257, %v400
  %402 = vmatmul.bf16.gmra.mxu0 %v319
  %v403 = vpop.f32.mrf.mxu0
  %v404 = vadd.f32 %v260, %v403
  %v405 = vpop.f32.mrf.mxu0
  %v406 = vadd.f32 %v262, %v405
  %407 = vmatmul.bf16.gmra.mxu0 %v322
  %v408 = vpop.f32.mrf.mxu0
  %v409 = vadd.f32 %v265, %v408
  %v410 = vpop.f32.mrf.mxu0
  %v411 = vadd.f32 %v267, %v410
  %412 = vdwg.mxu0
  %v413 = vperm.slane %v24, 0
  %v414 = vadd.f32 %v334, %v413
  %v415 = vadd.f32 %v336, %v413
  %v416 = vadd.f32 %v339, %v413
  %v417 = vadd.f32 %v341, %v413
  %v418 = vadd.f32 %v344, %v413
  %v419 = vadd.f32 %v346, %v413
  %v420 = vadd.f32 %v349, %v413
  %v421 = vadd.f32 %v351, %v413
  %v422 = vadd.f32 %v354, %v413
  %v423 = vadd.f32 %v356, %v413
  %v424 = vadd.f32 %v359, %v413
  %v425 = vadd.f32 %v361, %v413
  %v426 = vadd.f32 %v364, %v413
  %v427 = vadd.f32 %v366, %v413
  %v428 = vadd.f32 %v369, %v413
  %v429 = vadd.f32 %v371, %v413
  %v430 = vadd.f32 %v374, %v413
  %v431 = vadd.f32 %v376, %v413
  %v432 = vadd.f32 %v379, %v413
  %v433 = vadd.f32 %v381, %v413
  %v434 = vadd.f32 %v384, %v413
  %v435 = vadd.f32 %v386, %v413
  %v436 = vadd.f32 %v389, %v413
  %v437 = vadd.f32 %v391, %v413
  %v438 = vadd.f32 %v394, %v413
  %v439 = vadd.f32 %v396, %v413
  %v440 = vadd.f32 %v399, %v413
  %v441 = vadd.f32 %v401, %v413
  %v442 = vadd.f32 %v404, %v413
  %v443 = vadd.f32 %v406, %v413
  %v444 = vadd.f32 %v409, %v413
  %v445 = vadd.f32 %v411, %v413
  %v446 = vmax.f32 %v414, 0.0
  %v447 = vmax.f32 %v415, 0.0
  %v448 = vmax.f32 %v416, 0.0
  %v449 = vmax.f32 %v417, 0.0
  %v450 = vmax.f32 %v418, 0.0
  %v451 = vmax.f32 %v419, 0.0
  %v452 = vmax.f32 %v420, 0.0
  %v453 = vmax.f32 %v421, 0.0
  %v454 = vmax.f32 %v422, 0.0
  %v455 = vmax.f32 %v423, 0.0
  %v456 = vmax.f32 %v424, 0.0
  %v457 = vmax.f32 %v425, 0.0
  %v458 = vmax.f32 %v426, 0.0
  %v459 = vmax.f32 %v427, 0.0
  %v460 = vmax.f32 %v428, 0.0
  %v461 = vmax.f32 %v429, 0.0
  %v462 = vmax.f32 %v430, 0.0
  %v463 = vmax.f32 %v431, 0.0
  %v464 = vmax.f32 %v432, 0.0
  %v465 = vmax.f32 %v433, 0.0
  %v466 = vmax.f32 %v434, 0.0
  %v467 = vmax.f32 %v435, 0.0
  %v468 = vmax.f32 %v436, 0.0
  %v469 = vmax.f32 %v437, 0.0
  %v470 = vmax.f32 %v438, 0.0
  %v471 = vmax.f32 %v439, 0.0
  %v472 = vmax.f32 %v440, 0.0
  %v473 = vmax.f32 %v441, 0.0
  %v474 = vmax.f32 %v442, 0.0
  %v475 = vmax.f32 %v443, 0.0
  %v476 = vmax.f32 %v444, 0.0
  %v477 = vmax.f32 %v445, 0.0
  %vm478 = vcmask 261120
  %v479 = vsel %vm478, %v446, 0.0
  %v480 = vsel %vm478, %v447, 0.0
  %v481 = vadd.f32 %v479, %v480
  %v482 = vsel %vm478, %v448, 0.0
  %v483 = vadd.f32 %v481, %v482
  %v484 = vsel %vm478, %v449, 0.0
  %v485 = vadd.f32 %v483, %v484
  %v486 = vsel %vm478, %v450, 0.0
  %v487 = vadd.f32 %v485, %v486
  %v488 = vsel %vm478, %v451, 0.0
  %v489 = vadd.f32 %v487, %v488
  %v490 = vsel %vm478, %v452, 0.0
  %v491 = vadd.f32 %v489, %v490
  %v492 = vsel %vm478, %v453, 0.0
  %v493 = vadd.f32 %v491, %v492
  %v494 = vsel %vm478, %v454, 0.0
  %v495 = vadd.f32 %v493, %v494
  %v496 = vsel %vm478, %v455, 0.0
  %v497 = vadd.f32 %v495, %v496
  %v498 = vsel %vm478, %v456, 0.0
  %v499 = vadd.f32 %v497, %v498
  %v500 = vsel %vm478, %v457, 0.0
  %v501 = vadd.f32 %v499, %v500
  %v502 = vsel %vm478, %v458, 0.0
  %v503 = vadd.f32 %v501, %v502
  %v504 = vsel %vm478, %v459, 0.0
  %v505 = vadd.f32 %v503, %v504
  %v506 = vsel %vm478, %v460, 0.0
  %v507 = vadd.f32 %v505, %v506
  %v508 = vsel %vm478, %v461, 0.0
  %v509 = vadd.f32 %v507, %v508
  %v510 = vsel %vm478, %v462, 0.0
  %v511 = vadd.f32 %v509, %v510
  %v512 = vsel %vm478, %v463, 0.0
  %v513 = vadd.f32 %v511, %v512
  %v514 = vsel %vm478, %v464, 0.0
  %v515 = vadd.f32 %v513, %v514
  %v516 = vsel %vm478, %v465, 0.0
  %v517 = vadd.f32 %v515, %v516
  %v518 = vsel %vm478, %v466, 0.0
  %v519 = vadd.f32 %v517, %v518
  %v520 = vsel %vm478, %v467, 0.0
  %v521 = vadd.f32 %v519, %v520
  %v522 = vsel %vm478, %v468, 0.0
  %v523 = vadd.f32 %v521, %v522
  %v524 = vsel %vm478, %v469, 0.0
  %v525 = vadd.f32 %v523, %v524
  %v526 = vsel %vm478, %v470, 0.0
  %v527 = vadd.f32 %v525, %v526
  %v528 = vsel %vm478, %v471, 0.0
  %v529 = vadd.f32 %v527, %v528
  %v530 = vsel %vm478, %v472, 0.0
  %v531 = vadd.f32 %v529, %v530
  %v532 = vsel %vm478, %v473, 0.0
  %v533 = vadd.f32 %v531, %v532
  %v534 = vsel %vm478, %v474, 0.0
  %v535 = vadd.f32 %v533, %v534
  %v536 = vsel %vm478, %v475, 0.0
  %v537 = vadd.f32 %v535, %v536
  %v538 = vsel %vm478, %v476, 0.0
  %v539 = vadd.f32 %v537, %v538
  %v540 = vsel %vm478, %v477, 0.0
  %v541 = vadd.f32 %v539, %v540
  %v542 = vrot.slane %v541, 4
  %v543 = vadd.f32 %v541, %v542
  %v544 = vrot.slane %v543, 2
  %v545 = vadd.f32 %v543, %v544
  %v546 = vrot.slane %v545, 1
  %v547 = vadd.f32 %v545, %v546
  %v548 = vmul.f32 %v446, %v446
  %v549 = vmul.f32 %v447, %v447
  %v550 = vmul.f32 %v448, %v448
  %v551 = vmul.f32 %v449, %v449
  %v552 = vmul.f32 %v450, %v450
  %v553 = vmul.f32 %v451, %v451
  %v554 = vmul.f32 %v452, %v452
  %v555 = vmul.f32 %v453, %v453
  %v556 = vmul.f32 %v454, %v454
  %v557 = vmul.f32 %v455, %v455
  %v558 = vmul.f32 %v456, %v456
  %v559 = vmul.f32 %v457, %v457
  %v560 = vmul.f32 %v458, %v458
  %v561 = vmul.f32 %v459, %v459
  %v562 = vmul.f32 %v460, %v460
  %v563 = vmul.f32 %v461, %v461
  %v564 = vmul.f32 %v462, %v462
  %v565 = vmul.f32 %v463, %v463
  %v566 = vmul.f32 %v464, %v464
  %v567 = vmul.f32 %v465, %v465
  %v568 = vmul.f32 %v466, %v466
  %v569 = vmul.f32 %v467, %v467
  %v570 = vmul.f32 %v468, %v468
  %v571 = vmul.f32 %v469, %v469
  %v572 = vmul.f32 %v470, %v470
  %v573 = vmul.f32 %v471, %v471
  %v574 = vmul.f32 %v472, %v472
  %v575 = vmul.f32 %v473, %v473
  %v576 = vmul.f32 %v474, %v474
  %v577 = vmul.f32 %v475, %v475
  %v578 = vmul.f32 %v476, %v476
  %v579 = vmul.f32 %v477, %v477
  %v580 = vsel %vm478, %v548, 0.0
  %v581 = vsel %vm478, %v549, 0.0
  %v582 = vadd.f32 %v580, %v581
  %v583 = vsel %vm478, %v550, 0.0
  %v584 = vadd.f32 %v582, %v583
  %v585 = vsel %vm478, %v551, 0.0
  %v586 = vadd.f32 %v584, %v585
  %v587 = vsel %vm478, %v552, 0.0
  %v588 = vadd.f32 %v586, %v587
  %v589 = vsel %vm478, %v553, 0.0
  %v590 = vadd.f32 %v588, %v589
  %v591 = vsel %vm478, %v554, 0.0
  %v592 = vadd.f32 %v590, %v591
  %v593 = vsel %vm478, %v555, 0.0
  %v594 = vadd.f32 %v592, %v593
  %v595 = vsel %vm478, %v556, 0.0
  %v596 = vadd.f32 %v594, %v595
  %v597 = vsel %vm478, %v557, 0.0
  %v598 = vadd.f32 %v596, %v597
  %v599 = vsel %vm478, %v558, 0.0
  %v600 = vadd.f32 %v598, %v599
  %v601 = vsel %vm478, %v559, 0.0
  %v602 = vadd.f32 %v600, %v601
  %v603 = vsel %vm478, %v560, 0.0
  %v604 = vadd.f32 %v602, %v603
  %v605 = vsel %vm478, %v561, 0.0
  %v606 = vadd.f32 %v604, %v605
  %v607 = vsel %vm478, %v562, 0.0
  %v608 = vadd.f32 %v606, %v607
  %v609 = vsel %vm478, %v563, 0.0
  %v610 = vadd.f32 %v608, %v609
  %v611 = vsel %vm478, %v564, 0.0
  %v612 = vadd.f32 %v610, %v611
  %v613 = vsel %vm478, %v565, 0.0
  %v614 = vadd.f32 %v612, %v613
  %v615 = vsel %vm478, %v566, 0.0
  %v616 = vadd.f32 %v614, %v615
  %v617 = vsel %vm478, %v567, 0.0
  %v618 = vadd.f32 %v616, %v617
  %v619 = vsel %vm478, %v568, 0.0
  %v620 = vadd.f32 %v618, %v619
  %v621 = vsel %vm478, %v569, 0.0
  %v622 = vadd.f32 %v620, %v621
  %v623 = vsel %vm478, %v570, 0.0
  %v624 = vadd.f32 %v622, %v623
  %v625 = vsel %vm478, %v571, 0.0
  %v626 = vadd.f32 %v624, %v625
  %v627 = vsel %vm478, %v572, 0.0
  %v628 = vadd.f32 %v626, %v627
  %v629 = vsel %vm478, %v573, 0.0
  %v630 = vadd.f32 %v628, %v629
  %v631 = vsel %vm478, %v574, 0.0
  %v632 = vadd.f32 %v630, %v631
  %v633 = vsel %vm478, %v575, 0.0
  %v634 = vadd.f32 %v632, %v633
  %v635 = vsel %vm478, %v576, 0.0
  %v636 = vadd.f32 %v634, %v635
  %v637 = vsel %vm478, %v577, 0.0
  %v638 = vadd.f32 %v636, %v637
  %v639 = vsel %vm478, %v578, 0.0
  %v640 = vadd.f32 %v638, %v639
  %v641 = vsel %vm478, %v579, 0.0
  %v642 = vadd.f32 %v640, %v641
  %v643 = vrot.slane %v642, 4
  %v644 = vadd.f32 %v642, %v643
  %v645 = vrot.slane %v644, 2
  %v646 = vadd.f32 %v644, %v645
  %v647 = vrot.slane %v646, 1
  %v648 = vadd.f32 %v646, %v647
  %v649 = vmul.f32 %v547, 0.00390625
  %v650 = vmul.f32 %v648, 0.00390625
  %v651 = vmul.f32 %v649, %v649
  %v652 = vsub.f32 %v650, %v651
  %v653 = vmax.f32 %v652, 0.0
  %v654 = vsub.f32 %v446, %v649
  %v655 = vsub.f32 %v447, %v649
  %v656 = vsub.f32 %v448, %v649
  %v657 = vsub.f32 %v449, %v649
  %v658 = vsub.f32 %v450, %v649
  %v659 = vsub.f32 %v451, %v649
  %v660 = vsub.f32 %v452, %v649
  %v661 = vsub.f32 %v453, %v649
  %v662 = vsub.f32 %v454, %v649
  %v663 = vsub.f32 %v455, %v649
  %v664 = vsub.f32 %v456, %v649
  %v665 = vsub.f32 %v457, %v649
  %v666 = vsub.f32 %v458, %v649
  %v667 = vsub.f32 %v459, %v649
  %v668 = vsub.f32 %v460, %v649
  %v669 = vsub.f32 %v461, %v649
  %v670 = vsub.f32 %v462, %v649
  %v671 = vsub.f32 %v463, %v649
  %v672 = vsub.f32 %v464, %v649
  %v673 = vsub.f32 %v465, %v649
  %v674 = vsub.f32 %v466, %v649
  %v675 = vsub.f32 %v467, %v649
  %v676 = vsub.f32 %v468, %v649
  %v677 = vsub.f32 %v469, %v649
  %v678 = vsub.f32 %v470, %v649
  %v679 = vsub.f32 %v471, %v649
  %v680 = vsub.f32 %v472, %v649
  %v681 = vsub.f32 %v473, %v649
  %v682 = vsub.f32 %v474, %v649
  %v683 = vsub.f32 %v475, %v649
  %v684 = vsub.f32 %v476, %v649
  %v685 = vsub.f32 %v477, %v649
  %v686 = vadd.f32 %v653, 1e-05
  %v687 = vrsqrt.pop %v686
  %v688 = vmul.f32 %v687, %v686
  %v689 = vmul.f32 %v688, %v687
  %v690 = vmul.f32 0.5, %v689
  %v691 = vsub.f32 1.5, %v690
  %v692 = vmul.f32 %v687, %v691
  %vm693 = vweird.f32 %v686
  %vm694 = vweird.f32 %v687
  %vm695 = vmor %vm693, %vm694
  %v696 = vsel %vm695, %v687, %v692
  %v697 = vmul.f32 %v654, %v696
  %v698 = vmul.f32 %v655, %v696
  %v699 = vmul.f32 %v656, %v696
  %v700 = vmul.f32 %v657, %v696
  %v701 = vmul.f32 %v658, %v696
  %v702 = vmul.f32 %v659, %v696
  %v703 = vmul.f32 %v660, %v696
  %v704 = vmul.f32 %v661, %v696
  %v705 = vmul.f32 %v662, %v696
  %v706 = vmul.f32 %v663, %v696
  %v707 = vmul.f32 %v664, %v696
  %v708 = vmul.f32 %v665, %v696
  %v709 = vmul.f32 %v666, %v696
  %v710 = vmul.f32 %v667, %v696
  %v711 = vmul.f32 %v668, %v696
  %v712 = vmul.f32 %v669, %v696
  %v713 = vmul.f32 %v670, %v696
  %v714 = vmul.f32 %v671, %v696
  %v715 = vmul.f32 %v672, %v696
  %v716 = vmul.f32 %v673, %v696
  %v717 = vmul.f32 %v674, %v696
  %v718 = vmul.f32 %v675, %v696
  %v719 = vmul.f32 %v676, %v696
  %v720 = vmul.f32 %v677, %v696
  %v721 = vmul.f32 %v678, %v696
  %v722 = vmul.f32 %v679, %v696
  %v723 = vmul.f32 %v680, %v696
  %v724 = vmul.f32 %v681, %v696
  %v725 = vmul.f32 %v682, %v696
  %v726 = vmul.f32 %v683, %v696
  %v727 = vmul.f32 %v684, %v696
  %v728 = vmul.f32 %v685, %v696
  %v729 = vpack.c.bf16 %v698, %v697
  %v730 = vpack.c.bf16 %v700, %v699
  %v731 = vpack.c.bf16 %v702, %v701
  %v732 = vpack.c.bf16 %v704, %v703
  %v733 = vpack.c.bf16 %v706, %v705
  %v734 = vpack.c.bf16 %v708, %v707
  %v735 = vpack.c.bf16 %v710, %v709
  %v736 = vpack.c.bf16 %v712, %v711
  %v737 = vpack.c.bf16 %v714, %v713
  %v738 = vpack.c.bf16 %v716, %v715
  %v739 = vpack.c.bf16 %v718, %v717
  %v740 = vpack.c.bf16 %v720, %v719
  %v741 = vpack.c.bf16 %v722, %v721
  %v742 = vpack.c.bf16 %v724, %v723
  %v743 = vpack.c.bf16 %v726, %v725
  %v744 = vpack.c.bf16 %v728, %v727
  %v745 = vld [vmem:[%s4] sm:$0xf]
  %v746 = vld [vmem:[%s4 + $0x4] sm:$0xf]
  %v747 = vld [vmem:[%s4 + $0x8] sm:$0xf]
  %v748 = vld [vmem:[%s4 + $0xc] sm:$0xf]
  %v749 = vperm.slane %v25, 0
  %v754 = vunpack.c.l.b16 %v745
  %v755 = vunpack.c.l.b16 %v746
  %v756 = vunpack.c.l.b16 %v747
  %v757 = vunpack.c.l.b16 %v748
  %v758 = vpack.c.b16 %v755, %v754
  %v759 = vpack.c.b16 %v757, %v756
  %v763 = vsel %vm478, %v729, 0
  %v766 = vsel %vm478, %v730, 0
  %v769 = vsel %vm478, %v731, 0
  %v772 = vsel %vm478, %v732, 0
  %v775 = vsel %vm478, %v733, 0
  %v778 = vsel %vm478, %v734, 0
  %v781 = vsel %vm478, %v735, 0
  %v784 = vsel %vm478, %v736, 0
  %v787 = vsel %vm478, %v737, 0
  %v790 = vsel %vm478, %v738, 0
  %v793 = vsel %vm478, %v739, 0
  %v796 = vsel %vm478, %v740, 0
  %v799 = vsel %vm478, %v741, 0
  %v802 = vsel %vm478, %v742, 0
  %v805 = vsel %vm478, %v743, 0
  %v808 = vsel %vm478, %v744, 0
  %810 = vmatpush.bf16.msra.mxu0 0
  %811 = vmatpush.bf16.msra.mxu0 0
  %812 = vmatpush.bf16.msra.mxu0 0
  %813 = vmatpush.bf16.msra.mxu0 0
  %814 = vmatpush.bf16.msra.mxu0 0
  %815 = vmatpush.bf16.msra.mxu0 0
  %816 = vmatpush.bf16.msra.mxu0 %v759
  %817 = vmatpush.bf16.msra.mxu0 %v758
  %818 = vmatmul.bf16.gmra.mxu0 %v763
  %v819 = vpop.f32.mrf.mxu0
  %v820 = vadd.f32 %v749, %v819
  %v821 = vpop.f32.mrf.mxu0
  %v822 = vadd.f32 %v749, %v821
  %823 = vmatmul.bf16.gmra.mxu0 %v766
  %v824 = vpop.f32.mrf.mxu0
  %v825 = vadd.f32 %v749, %v824
  %v826 = vpop.f32.mrf.mxu0
  %v827 = vadd.f32 %v749, %v826
  %828 = vmatmul.bf16.gmra.mxu0 %v769
  %v829 = vpop.f32.mrf.mxu0
  %v830 = vadd.f32 %v749, %v829
  %v831 = vpop.f32.mrf.mxu0
  %v832 = vadd.f32 %v749, %v831
  %833 = vmatmul.bf16.gmra.mxu0 %v772
  %v834 = vpop.f32.mrf.mxu0
  %v835 = vadd.f32 %v749, %v834
  %v836 = vpop.f32.mrf.mxu0
  %v837 = vadd.f32 %v749, %v836
  %838 = vmatmul.bf16.gmra.mxu0 %v775
  %v839 = vpop.f32.mrf.mxu0
  %v840 = vadd.f32 %v749, %v839
  %v841 = vpop.f32.mrf.mxu0
  %v842 = vadd.f32 %v749, %v841
  %843 = vmatmul.bf16.gmra.mxu0 %v778
  %v844 = vpop.f32.mrf.mxu0
  %v845 = vadd.f32 %v749, %v844
  %v846 = vpop.f32.mrf.mxu0
  %v847 = vadd.f32 %v749, %v846
  %848 = vmatmul.bf16.gmra.mxu0 %v781
  %v849 = vpop.f32.mrf.mxu0
  %v850 = vadd.f32 %v749, %v849
  %v851 = vpop.f32.mrf.mxu0
  %v852 = vadd.f32 %v749, %v851
  %853 = vmatmul.bf16.gmra.mxu0 %v784
  %v854 = vpop.f32.mrf.mxu0
  %v855 = vadd.f32 %v749, %v854
  %v856 = vpop.f32.mrf.mxu0
  %v857 = vadd.f32 %v749, %v856
  %858 = vmatmul.bf16.gmra.mxu0 %v787
  %v859 = vpop.f32.mrf.mxu0
  %v860 = vadd.f32 %v749, %v859
  %v861 = vpop.f32.mrf.mxu0
  %v862 = vadd.f32 %v749, %v861
  %863 = vmatmul.bf16.gmra.mxu0 %v790
  %v864 = vpop.f32.mrf.mxu0
  %v865 = vadd.f32 %v749, %v864
  %v866 = vpop.f32.mrf.mxu0
  %v867 = vadd.f32 %v749, %v866
  %868 = vmatmul.bf16.gmra.mxu0 %v793
  %v869 = vpop.f32.mrf.mxu0
  %v870 = vadd.f32 %v749, %v869
  %v871 = vpop.f32.mrf.mxu0
  %v872 = vadd.f32 %v749, %v871
  %873 = vmatmul.bf16.gmra.mxu0 %v796
  %v874 = vpop.f32.mrf.mxu0
  %v875 = vadd.f32 %v749, %v874
  %v876 = vpop.f32.mrf.mxu0
  %v877 = vadd.f32 %v749, %v876
  %878 = vmatmul.bf16.gmra.mxu0 %v799
  %v879 = vpop.f32.mrf.mxu0
  %v880 = vadd.f32 %v749, %v879
  %v881 = vpop.f32.mrf.mxu0
  %v882 = vadd.f32 %v749, %v881
  %883 = vmatmul.bf16.gmra.mxu0 %v802
  %v884 = vpop.f32.mrf.mxu0
  %v885 = vadd.f32 %v749, %v884
  %v886 = vpop.f32.mrf.mxu0
  %v887 = vadd.f32 %v749, %v886
  %888 = vmatmul.bf16.gmra.mxu0 %v805
  %v889 = vpop.f32.mrf.mxu0
  %v890 = vadd.f32 %v749, %v889
  %v891 = vpop.f32.mrf.mxu0
  %v892 = vadd.f32 %v749, %v891
  %893 = vmatmul.bf16.gmra.mxu0 %v808
  %v894 = vpop.f32.mrf.mxu0
  %v895 = vadd.f32 %v749, %v894
  %v896 = vpop.f32.mrf.mxu0
  %v897 = vadd.f32 %v749, %v896
  %898 = vdwg.mxu0
  %v899 = vmax.f32 %v820, 0.0
  %v900 = vmax.f32 %v822, 0.0
  %v901 = vmax.f32 %v825, 0.0
  %v902 = vmax.f32 %v827, 0.0
  %v903 = vmax.f32 %v830, 0.0
  %v904 = vmax.f32 %v832, 0.0
  %v905 = vmax.f32 %v835, 0.0
  %v906 = vmax.f32 %v837, 0.0
  %v907 = vmax.f32 %v840, 0.0
  %v908 = vmax.f32 %v842, 0.0
  %v909 = vmax.f32 %v845, 0.0
  %v910 = vmax.f32 %v847, 0.0
  %v911 = vmax.f32 %v850, 0.0
  %v912 = vmax.f32 %v852, 0.0
  %v913 = vmax.f32 %v855, 0.0
  %v914 = vmax.f32 %v857, 0.0
  %v915 = vmax.f32 %v860, 0.0
  %v916 = vmax.f32 %v862, 0.0
  %v917 = vmax.f32 %v865, 0.0
  %v918 = vmax.f32 %v867, 0.0
  %v919 = vmax.f32 %v870, 0.0
  %v920 = vmax.f32 %v872, 0.0
  %v921 = vmax.f32 %v875, 0.0
  %v922 = vmax.f32 %v877, 0.0
  %v923 = vmax.f32 %v880, 0.0
  %v924 = vmax.f32 %v882, 0.0
  %v925 = vmax.f32 %v885, 0.0
  %v926 = vmax.f32 %v887, 0.0
  %v927 = vmax.f32 %v890, 0.0
  %v928 = vmax.f32 %v892, 0.0
  %v929 = vmax.f32 %v895, 0.0
  %v930 = vmax.f32 %v897, 0.0
  %v931 = vperm.slane %v26, 0
  %v932 = vmul.f32 %v899, %v931
  %v933 = vmul.f32 %v900, %v931
  %v934 = vmul.f32 %v901, %v931
  %v935 = vmul.f32 %v902, %v931
  %v936 = vmul.f32 %v903, %v931
  %v937 = vmul.f32 %v904, %v931
  %v938 = vmul.f32 %v905, %v931
  %v939 = vmul.f32 %v906, %v931
  %v940 = vmul.f32 %v907, %v931
  %v941 = vmul.f32 %v908, %v931
  %v942 = vmul.f32 %v909, %v931
  %v943 = vmul.f32 %v910, %v931
  %v944 = vmul.f32 %v911, %v931
  %v945 = vmul.f32 %v912, %v931
  %v946 = vmul.f32 %v913, %v931
  %v947 = vmul.f32 %v914, %v931
  %v948 = vmul.f32 %v915, %v931
  %v949 = vmul.f32 %v916, %v931
  %v950 = vmul.f32 %v917, %v931
  %v951 = vmul.f32 %v918, %v931
  %v952 = vmul.f32 %v919, %v931
  %v953 = vmul.f32 %v920, %v931
  %v954 = vmul.f32 %v921, %v931
  %v955 = vmul.f32 %v922, %v931
  %v956 = vmul.f32 %v923, %v931
  %v957 = vmul.f32 %v924, %v931
  %v958 = vmul.f32 %v925, %v931
  %v959 = vmul.f32 %v926, %v931
  %v960 = vmul.f32 %v927, %v931
  %v961 = vmul.f32 %v928, %v931
  %v962 = vmul.f32 %v929, %v931
  %v963 = vmul.f32 %v930, %v931
  %v964 = vsel %vm478, %v932, 0.0
  %965 = vadd.xlane.f32.xlu0 %v964
  %v966 = vpop.xlane.xlu0 %965
  %v967 = vsel %vm478, %v933, 0.0
  %968 = vadd.xlane.f32.xlu0 %v967
  %v969 = vpop.xlane.xlu0 %968
  %v970 = vsel %vm478, %v934, 0.0
  %971 = vadd.xlane.f32.xlu0 %v970
  %v972 = vpop.xlane.xlu0 %971
  %v973 = vsel %vm478, %v935, 0.0
  %974 = vadd.xlane.f32.xlu0 %v973
  %v975 = vpop.xlane.xlu0 %974
  %v976 = vsel %vm478, %v936, 0.0
  %977 = vadd.xlane.f32.xlu0 %v976
  %v978 = vpop.xlane.xlu0 %977
  %v979 = vsel %vm478, %v937, 0.0
  %980 = vadd.xlane.f32.xlu0 %v979
  %v981 = vpop.xlane.xlu0 %980
  %v982 = vsel %vm478, %v938, 0.0
  %983 = vadd.xlane.f32.xlu0 %v982
  %v984 = vpop.xlane.xlu0 %983
  %v985 = vsel %vm478, %v939, 0.0
  %986 = vadd.xlane.f32.xlu0 %v985
  %v987 = vpop.xlane.xlu0 %986
  %v988 = vsel %vm478, %v940, 0.0
  %989 = vadd.xlane.f32.xlu0 %v988
  %v990 = vpop.xlane.xlu0 %989
  %v991 = vsel %vm478, %v941, 0.0
  %992 = vadd.xlane.f32.xlu0 %v991
  %v993 = vpop.xlane.xlu0 %992
  %v994 = vsel %vm478, %v942, 0.0
  %995 = vadd.xlane.f32.xlu0 %v994
  %v996 = vpop.xlane.xlu0 %995
  %v997 = vsel %vm478, %v943, 0.0
  %998 = vadd.xlane.f32.xlu0 %v997
  %v999 = vpop.xlane.xlu0 %998
  %v1000 = vsel %vm478, %v944, 0.0
  %1001 = vadd.xlane.f32.xlu0 %v1000
  %v1002 = vpop.xlane.xlu0 %1001
  %v1003 = vsel %vm478, %v945, 0.0
  %1004 = vadd.xlane.f32.xlu0 %v1003
  %v1005 = vpop.xlane.xlu0 %1004
  %v1006 = vsel %vm478, %v946, 0.0
  %1007 = vadd.xlane.f32.xlu0 %v1006
  %v1008 = vpop.xlane.xlu0 %1007
  %v1009 = vsel %vm478, %v947, 0.0
  %1010 = vadd.xlane.f32.xlu0 %v1009
  %v1011 = vpop.xlane.xlu0 %1010
  %v1012 = vsel %vm478, %v948, 0.0
  %1013 = vadd.xlane.f32.xlu0 %v1012
  %v1014 = vpop.xlane.xlu0 %1013
  %v1015 = vsel %vm478, %v949, 0.0
  %1016 = vadd.xlane.f32.xlu0 %v1015
  %v1017 = vpop.xlane.xlu0 %1016
  %v1018 = vsel %vm478, %v950, 0.0
  %1019 = vadd.xlane.f32.xlu0 %v1018
  %v1020 = vpop.xlane.xlu0 %1019
  %v1021 = vsel %vm478, %v951, 0.0
  %1022 = vadd.xlane.f32.xlu0 %v1021
  %v1023 = vpop.xlane.xlu0 %1022
  %v1024 = vsel %vm478, %v952, 0.0
  %1025 = vadd.xlane.f32.xlu0 %v1024
  %v1026 = vpop.xlane.xlu0 %1025
  %v1027 = vsel %vm478, %v953, 0.0
  %1028 = vadd.xlane.f32.xlu0 %v1027
  %v1029 = vpop.xlane.xlu0 %1028
  %v1030 = vsel %vm478, %v954, 0.0
  %1031 = vadd.xlane.f32.xlu0 %v1030
  %v1032 = vpop.xlane.xlu0 %1031
  %v1033 = vsel %vm478, %v955, 0.0
  %1034 = vadd.xlane.f32.xlu0 %v1033
  %v1035 = vpop.xlane.xlu0 %1034
  %v1036 = vsel %vm478, %v956, 0.0
  %1037 = vadd.xlane.f32.xlu0 %v1036
  %v1038 = vpop.xlane.xlu0 %1037
  %v1039 = vsel %vm478, %v957, 0.0
  %1040 = vadd.xlane.f32.xlu0 %v1039
  %v1041 = vpop.xlane.xlu0 %1040
  %v1042 = vsel %vm478, %v958, 0.0
  %1043 = vadd.xlane.f32.xlu0 %v1042
  %v1044 = vpop.xlane.xlu0 %1043
  %v1045 = vsel %vm478, %v959, 0.0
  %1046 = vadd.xlane.f32.xlu0 %v1045
  %v1047 = vpop.xlane.xlu0 %1046
  %v1048 = vsel %vm478, %v960, 0.0
  %1049 = vadd.xlane.f32.xlu0 %v1048
  %v1050 = vpop.xlane.xlu0 %1049
  %v1051 = vsel %vm478, %v961, 0.0
  %1052 = vadd.xlane.f32.xlu0 %v1051
  %v1053 = vpop.xlane.xlu0 %1052
  %v1054 = vsel %vm478, %v962, 0.0
  %1055 = vadd.xlane.f32.xlu0 %v1054
  %v1056 = vpop.xlane.xlu0 %1055
  %v1057 = vsel %vm478, %v963, 0.0
  %1058 = vadd.xlane.f32.xlu0 %v1057
  %v1059 = vpop.xlane.xlu0 %1058
  %v1060 = vperm.slane %v27, 0
  %v1061 = vadd.f32 %v966, %v1060
  %v1062 = vadd.f32 %v969, %v1060
  %v1063 = vadd.f32 %v972, %v1060
  %v1064 = vadd.f32 %v975, %v1060
  %v1065 = vadd.f32 %v978, %v1060
  %v1066 = vadd.f32 %v981, %v1060
  %v1067 = vadd.f32 %v984, %v1060
  %v1068 = vadd.f32 %v987, %v1060
  %v1069 = vadd.f32 %v990, %v1060
  %v1070 = vadd.f32 %v993, %v1060
  %v1071 = vadd.f32 %v996, %v1060
  %v1072 = vadd.f32 %v999, %v1060
  %v1073 = vadd.f32 %v1002, %v1060
  %v1074 = vadd.f32 %v1005, %v1060
  %v1075 = vadd.f32 %v1008, %v1060
  %v1076 = vadd.f32 %v1011, %v1060
  %v1077 = vadd.f32 %v1014, %v1060
  %v1078 = vadd.f32 %v1017, %v1060
  %v1079 = vadd.f32 %v1020, %v1060
  %v1080 = vadd.f32 %v1023, %v1060
  %v1081 = vadd.f32 %v1026, %v1060
  %v1082 = vadd.f32 %v1029, %v1060
  %v1083 = vadd.f32 %v1032, %v1060
  %v1084 = vadd.f32 %v1035, %v1060
  %v1085 = vadd.f32 %v1038, %v1060
  %v1086 = vadd.f32 %v1041, %v1060
  %v1087 = vadd.f32 %v1044, %v1060
  %v1088 = vadd.f32 %v1047, %v1060
  %v1089 = vadd.f32 %v1050, %v1060
  %v1090 = vadd.f32 %v1053, %v1060
  %v1091 = vadd.f32 %v1056, %v1060
  %v1092 = vadd.f32 %v1059, %v1060
  %vm1093 = vcmask 7168
  %1094 = vst.msk [vmem:[%s6] sm:$0xff] %vm1093, %v1061
  %1095 = vst.msk [vmem:[%s6 + $0x8] sm:$0xff] %vm1093, %v1062
  %1096 = vst.msk [vmem:[%s6 + $0x10] sm:$0xff] %vm1093, %v1063
  %1097 = vst.msk [vmem:[%s6 + $0x18] sm:$0xff] %vm1093, %v1064
  %1098 = vst.msk [vmem:[%s6 + $0x20] sm:$0xff] %vm1093, %v1065
  %1099 = vst.msk [vmem:[%s6 + $0x28] sm:$0xff] %vm1093, %v1066
  %1100 = vst.msk [vmem:[%s6 + $0x30] sm:$0xff] %vm1093, %v1067
  %1101 = vst.msk [vmem:[%s6 + $0x38] sm:$0xff] %vm1093, %v1068
  %1102 = vst.msk [vmem:[%s6 + $0x40] sm:$0xff] %vm1093, %v1069
  %1103 = vst.msk [vmem:[%s6 + $0x48] sm:$0xff] %vm1093, %v1070
  %1104 = vst.msk [vmem:[%s6 + $0x50] sm:$0xff] %vm1093, %v1071
  %1105 = vst.msk [vmem:[%s6 + $0x58] sm:$0xff] %vm1093, %v1072
  %1106 = vst.msk [vmem:[%s6 + $0x60] sm:$0xff] %vm1093, %v1073
  %1107 = vst.msk [vmem:[%s6 + $0x68] sm:$0xff] %vm1093, %v1074
  %1108 = vst.msk [vmem:[%s6 + $0x70] sm:$0xff] %vm1093, %v1075
  %1109 = vst.msk [vmem:[%s6 + $0x78] sm:$0xff] %vm1093, %v1076
  %1110 = vst.msk [vmem:[%s6 + $0x80] sm:$0xff] %vm1093, %v1077
  %1111 = vst.msk [vmem:[%s6 + $0x88] sm:$0xff] %vm1093, %v1078
  %1112 = vst.msk [vmem:[%s6 + $0x90] sm:$0xff] %vm1093, %v1079
  %1113 = vst.msk [vmem:[%s6 + $0x98] sm:$0xff] %vm1093, %v1080
  %1114 = vst.msk [vmem:[%s6 + $0xa0] sm:$0xff] %vm1093, %v1081
  %1115 = vst.msk [vmem:[%s6 + $0xa8] sm:$0xff] %vm1093, %v1082
  %1116 = vst.msk [vmem:[%s6 + $0xb0] sm:$0xff] %vm1093, %v1083
  %1117 = vst.msk [vmem:[%s6 + $0xb8] sm:$0xff] %vm1093, %v1084
  %1118 = vst.msk [vmem:[%s6 + $0xc0] sm:$0xff] %vm1093, %v1085
  %1119 = vst.msk [vmem:[%s6 + $0xc8] sm:$0xff] %vm1093, %v1086
  %1120 = vst.msk [vmem:[%s6 + $0xd0] sm:$0xff] %vm1093, %v1087
  %1121 = vst.msk [vmem:[%s6 + $0xd8] sm:$0xff] %vm1093, %v1088
  %1122 = vst.msk [vmem:[%s6 + $0xe0] sm:$0xff] %vm1093, %v1089
  %1123 = vst.msk [vmem:[%s6 + $0xe8] sm:$0xff] %vm1093, %v1090
  %1124 = vst.msk [vmem:[%s6 + $0xf0] sm:$0xff] %vm1093, %v1091
  %1125 = vst.msk [vmem:[%s6 + $0xf8] sm:$0xff] %vm1093, %v1092
  // Predicated region
  $region26: #{critic_forward.1} parent=0 // pred_check
    _
  $region27: #{critic_forward.1} parent=0 // pred_check_branch
    %1127 = sbr.rel (0) target = $region29
  $region28: #{critic_forward.1} parent=0 // pred_region
    _
  $region29: #{critic_forward.1} parent=0 // pred_fallthru
    _
  // Predicated region
  $region30: #{critic_forward.1} parent=0 // pred_check
    _
  $region31: #{critic_forward.1} parent=0 // pred_check_branch
    %1129 = sbr.rel (0) target = $region33
  $region32: #{critic_forward.1} parent=0 // pred_region
    _
  $region33: #{critic_forward.1} parent=0 // pred_fallthru
    _

</llo_original>
